<compile_context>
chip_gen: v5e
topology: v5e:2x2
jax: 0.10.0
libtpu: 0.0.40
codegen_flags: <defaults>
</compile_context>

<pallas_src>
import functools
import math

import jax
import jax.numpy as jnp
from jax.experimental import pallas as pl
from jax.experimental.pallas import tpu as pltpu

_IN, _H1, _H2 = 5, 256, 512


def _gelu_exact(x):
    # nn.GELU() default (erf). Used only by the host-side reference.
    return 0.5 * x * (1.0 + jax.lax.erf(x * (1.0 / math.sqrt(2.0))))


def _gelu_tanh(x):
    # tanh-approximate GELU: tanh goes to the EUP (own VLIW slot) instead of an
    # erf polynomial on the VALU. Deviation from exact GELU is ~3e-4, well
    # inside the output tolerance after the sigmoid.
    c = jnp.asarray(math.sqrt(2.0 / math.pi), x.dtype)
    k = jnp.asarray(0.044715, x.dtype)
    half = jnp.asarray(0.5, x.dtype)
    one = jnp.asarray(1.0, x.dtype)
    return half * x * (one + jnp.tanh(c * (x + k * x * x * x)))


def _default_compute_dtype():
    # bf16 VALU/EUP throughput exists on v6e/v7x; v5e (and older) lack it, so
    # keep the elementwise GELU math in f32 there.
    try:
        kind = jax.devices()[0].device_kind.lower()
    except Exception:
        return jnp.float32
    return jnp.bfloat16 if ("v6" in kind or "v7" in kind) else jnp.float32


def ann_kernel(x_ref, w1_ref, b1_ref, w2_ref, b2_ref, w3_ref, b3_ref, o_ref,
               *, compute_dtype):
    # ---- layer 1: (TB, 8) @ (8, 256) on the MXU (K padded 5 -> 8 in wrapper).
    z1 = jnp.dot(x_ref[...], w1_ref[...], preferred_element_type=jnp.float32)
    h1 = _gelu_tanh((z1 + b1_ref[...]).astype(compute_dtype))        # (TB, 256)

    # ---- layer 2: the only heavy matmul (256x512). bf16 operands, f32 acc.
    z2 = jnp.dot(h1.astype(jnp.bfloat16), w2_ref[...],
                 preferred_element_type=jnp.float32) + b2_ref[...]
    h2 = _gelu_tanh(z2.astype(compute_dtype))                        # (TB, 512)

    # ---- layer 3 (N=1): VPU multiply + lane reduction (degenerate for MXU).
    logit = jnp.sum(h2.astype(jnp.float32) * w3_ref[...], axis=-1,
                    keepdims=True) + b3_ref[...]                     # (TB, 1)
    o_ref[...] = jax.nn.sigmoid(logit).astype(o_ref.dtype)


def _round_up(n, m):
    return ((n + m - 1) // m) * m


def _pick_tile(B, tb):
    # Batch tile: multiple of 8 sublanes. Large default amortizes the ~0.35 us
    # per-grid-step overhead; for big batches cap it so the grid keeps >= 2
    # steps and the "parallel" axis can shard across v7x's two TensorCores.
    tb = max(8, min(tb, _round_up(B, 8)))
    if B >= 512:
        tb = min(tb, max(128, _round_up(pl.cdiv(B, 2), 128)))
    return tb


def prepare_params(params):
    """One-time weight prep (outside the hot path): pad w1's K to 8 so layer 1
    can run on the MXU, cast w2 to bf16 (MXU operands), lay w3 out as a row."""
    w1, b1, w2, b2, w3, b3 = params
    k_pad = _round_up(w1.shape[0], 8)
    w1p = jnp.pad(w1.astype(jnp.float32), ((0, k_pad - w1.shape[0]), (0, 0)))
    return (w1p,
            b1.reshape(1, -1).astype(jnp.float32),
            w2.astype(jnp.bfloat16),
            b2.reshape(1, -1).astype(jnp.float32),
            w3.reshape(1, -1).astype(jnp.float32),
            b3.reshape(1, -1).astype(jnp.float32))


def ann_forward(x, prepared, *, tb=2048, compute_dtype=None):
    """x: (B, 5) float32. prepared: output of prepare_params(params)."""
    w1p, b1, w2_bf16, b2, w3_row, b3 = prepared
    if compute_dtype is None:
        compute_dtype = _default_compute_dtype()

    B = x.shape[0]
    tb = _pick_tile(B, tb)
    nt = pl.cdiv(B, tb)

    # Pad the feature axis 5 -> 8 (matches w1p); tiny elementwise op. The batch
    # axis is NOT padded: Pallas handles the partial last block, rows are
    # independent, and padded output rows are sliced off below.
    x8 = jnp.pad(x, ((0, 0), (0, w1p.shape[0] - x.shape[1])))

    kernel = functools.partial(ann_kernel, compute_dtype=compute_dtype)

    def resident(a):
        nd = a.ndim
        return pl.BlockSpec(a.shape, lambda i, _nd=nd: (0,) * _nd)

    out = pl.pallas_call(
        kernel,
        out_shape=jax.ShapeDtypeStruct((nt * tb, 1), jnp.float32),
        grid=(nt,),
        in_specs=[
            pl.BlockSpec((tb, w1p.shape[0]), lambda i: (i, 0)),  # x: tiled over batch
            resident(w1p), resident(b1),                         # weights stay VMEM-resident
            resident(w2_bf16), resident(b2),
            resident(w3_row), resident(b3),
        ],
        out_specs=pl.BlockSpec((tb, 1), lambda i: (i, 0)),
        compiler_params=pltpu.CompilerParams(
            dimension_semantics=("parallel",),   # batch tiles shard across TCs (v7x)
            vmem_limit_bytes=48 * 1024 * 1024,   # headroom for tb up to 2048; < v7x's 64 MiB
        ),
    )(x8, w1p, b1, w2_bf16, b2, w3_row, b3)
    return out[:B]


def init_params(key):
    """Deterministic init mimicking nn.Linear's uniform(-1/sqrt(fan_in), +...)."""
    def linear(key, fan_in, fan_out):
        kw, kb = jax.random.split(key)
        bound = 1.0 / math.sqrt(fan_in)
        # Stored as (in, out) so the math is x @ W + b.
        w = jax.random.uniform(kw, (fan_in, fan_out), jnp.float32, -bound, bound)
        b = jax.random.uniform(kb, (1, fan_out), jnp.float32, -bound, bound)
        return w, b

    k1, k2, k3 = jax.random.split(key, 3)
    w1, b1 = linear(k1, _IN, _H1)
    w2, b2 = linear(k2, _H1, _H2)
    w3, b3 = linear(k3, _H2, 1)
    return (w1, b1, w2, b2, w3, b3)


if __name__ == "__main__":
    key = jax.random.PRNGKey(0)
    kp, kx = jax.random.split(key)

    params = init_params(kp)
    prepared = prepare_params(params)

    # Small batch that is NOT a multiple of the tile: exercises the multi-step
    # grid, VMEM-resident weights, and the partial last block.
    B = 20
    x = jax.random.normal(kx, (B, _IN), jnp.float32)

    # Plain-JAX f32 reference with exact (erf) GELU, matching nn.GELU()'s
    # default. Kernel uses tanh-approx GELU + bf16 matmul operands, so allow a
    # small absolute tolerance on the sigmoid output.
    w1, b1, w2, b2, w3, b3 = params
    h = _gelu_exact(x @ w1 + b1)
    h = _gelu_exact(h @ w2 + b2)
    ref = jax.nn.sigmoid(h @ w3 + b3)

    # 1) tiny tile -> multi-step grid with a partial last input block.
    fwd_small = jax.jit(functools.partial(ann_forward, tb=8))
    out = jax.block_until_ready(fwd_small(x, prepared))
    assert out.shape == (B, 1)
    err = float(jnp.abs(out - ref).max())
    assert jnp.allclose(out, ref, atol=2e-2, rtol=0.0), err

    # 2) default tile path (single block here, same code path as large batches).
    fwd_default = jax.jit(ann_forward)
    out2 = jax.block_until_ready(fwd_default(x, prepared))
    assert out2.shape == (B, 1)
    err2 = float(jnp.abs(out2 - ref).max())
    assert jnp.allclose(out2, ref, atol=2e-2, rtol=0.0), err2

    print("KERNEL_OK")
</pallas_src>

<mosaic_0001>
module attributes {stable_mosaic.version = 11 : i64} {
  func.func @ann_kernel(%arg0: i32, %arg1: memref<8x8xf32, #tpu.memory_space<vmem>>, %arg2: memref<8x256xf32, #tpu.memory_space<vmem>>, %arg3: memref<1x256xf32, #tpu.memory_space<vmem>>, %arg4: memref<256x512xbf16, #tpu.memory_space<vmem>>, %arg5: memref<1x512xf32, #tpu.memory_space<vmem>>, %arg6: memref<1x512xf32, #tpu.memory_space<vmem>>, %arg7: memref<1x1xf32, #tpu.memory_space<vmem>>, %arg8: memref<8x1xf32, #tpu.memory_space<vmem>>) attributes {dimension_semantics = [#tpu.dimension_semantics<parallel>], iteration_bounds = array<i64: 3>, scalar_prefetch = 0 : i64, scratch_operands = 0 : i64, tpu.core_type = #tpu.core_type<tc>, window_params = [{transform_indices = @transform_0, window_bounds = array<i64: 8, 8>}, {pipeline_mode = #tpu.pipeline_mode<synchronous>, transform_indices = @transform_1, window_bounds = array<i64: 8, 256>}, {pipeline_mode = #tpu.pipeline_mode<synchronous>, transform_indices = @transform_2, window_bounds = array<i64: 1, 256>}, {pipeline_mode = #tpu.pipeline_mode<synchronous>, transform_indices = @transform_3, window_bounds = array<i64: 256, 512>}, {pipeline_mode = #tpu.pipeline_mode<synchronous>, transform_indices = @transform_4, window_bounds = array<i64: 1, 512>}, {pipeline_mode = #tpu.pipeline_mode<synchronous>, transform_indices = @transform_5, window_bounds = array<i64: 1, 512>}, {pipeline_mode = #tpu.pipeline_mode<synchronous>, transform_indices = @transform_6, window_bounds = array<i64: 1, 1>}, {transform_indices = @transform_7, window_bounds = array<i64: 8, 1>}]} {
    %c0 = arith.constant 0 : index
    %c0_0 = arith.constant 0 : index
    %0 = vector.load %arg1[%c0, %c0_0] : memref<8x8xf32, #tpu.memory_space<vmem>>, vector<8x8xf32>
    %c0_1 = arith.constant 0 : index
    %c0_2 = arith.constant 0 : index
    %1 = vector.load %arg2[%c0_1, %c0_2] : memref<8x256xf32, #tpu.memory_space<vmem>>, vector<8x256xf32>
    %cst = arith.constant dense<0.000000e+00> : vector<8x256xf32>
    %2 = tpu.matmul %0, %1, %cst {dimension_numbers = #tpu.dot_dimension_numbers<[1], [0], [0], [1], [0, 0, 1, 1], [], []>} : vector<8x8xf32>, vector<8x256xf32>, vector<8x256xf32> -> vector<8x256xf32>
    %c0_3 = arith.constant 0 : index
    %c0_4 = arith.constant 0 : index
    %3 = vector.load %arg3[%c0_3, %c0_4] : memref<1x256xf32, #tpu.memory_space<vmem>>, vector<1x256xf32>
    %4 = vector.broadcast %3 : vector<1x256xf32> to vector<8x256xf32>
    %5 = arith.addf %2, %4 : vector<8x256xf32>
    %cst_5 = arith.constant 5.000000e-01 : f32
    %6 = vector.broadcast %cst_5 : f32 to vector<8x256xf32>
    %7 = arith.mulf %6, %5 : vector<8x256xf32>
    %cst_6 = arith.constant 4.471500e-02 : f32
    %8 = vector.broadcast %cst_6 : f32 to vector<8x256xf32>
    %9 = arith.mulf %8, %5 : vector<8x256xf32>
    %10 = arith.mulf %9, %5 : vector<8x256xf32>
    %11 = arith.mulf %10, %5 : vector<8x256xf32>
    %12 = arith.addf %5, %11 : vector<8x256xf32>
    %cst_7 = arith.constant 0.797884583 : f32
    %13 = vector.broadcast %cst_7 : f32 to vector<8x256xf32>
    %14 = arith.mulf %13, %12 : vector<8x256xf32>
    %15 = math.tanh %14 : vector<8x256xf32>
    %cst_8 = arith.constant 1.000000e+00 : f32
    %16 = vector.broadcast %cst_8 : f32 to vector<8x256xf32>
    %17 = arith.addf %16, %15 : vector<8x256xf32>
    %18 = arith.mulf %7, %17 : vector<8x256xf32>
    %19 = arith.truncf %18 : vector<8x256xf32> to vector<8x256xbf16>
    %c0_9 = arith.constant 0 : index
    %c0_10 = arith.constant 0 : index
    %20 = vector.load %arg4[%c0_9, %c0_10] : memref<256x512xbf16, #tpu.memory_space<vmem>>, vector<256x512xbf16>
    %cst_11 = arith.constant dense<0.000000e+00> : vector<8x512xf32>
    %21 = tpu.matmul %19, %20, %cst_11 {dimension_numbers = #tpu.dot_dimension_numbers<[1], [0], [0], [1], [0, 0, 1, 1], [], []>} : vector<8x256xbf16>, vector<256x512xbf16>, vector<8x512xf32> -> vector<8x512xf32>
    %c0_12 = arith.constant 0 : index
    %c0_13 = arith.constant 0 : index
    %22 = vector.load %arg5[%c0_12, %c0_13] : memref<1x512xf32, #tpu.memory_space<vmem>>, vector<1x512xf32>
    %23 = vector.broadcast %22 : vector<1x512xf32> to vector<8x512xf32>
    %24 = arith.addf %21, %23 : vector<8x512xf32>
    %cst_14 = arith.constant 5.000000e-01 : f32
    %25 = vector.broadcast %cst_14 : f32 to vector<8x512xf32>
    %26 = arith.mulf %25, %24 : vector<8x512xf32>
    %cst_15 = arith.constant 4.471500e-02 : f32
    %27 = vector.broadcast %cst_15 : f32 to vector<8x512xf32>
    %28 = arith.mulf %27, %24 : vector<8x512xf32>
    %29 = arith.mulf %28, %24 : vector<8x512xf32>
    %30 = arith.mulf %29, %24 : vector<8x512xf32>
    %31 = arith.addf %24, %30 : vector<8x512xf32>
    %cst_16 = arith.constant 0.797884583 : f32
    %32 = vector.broadcast %cst_16 : f32 to vector<8x512xf32>
    %33 = arith.mulf %32, %31 : vector<8x512xf32>
    %34 = math.tanh %33 : vector<8x512xf32>
    %cst_17 = arith.constant 1.000000e+00 : f32
    %35 = vector.broadcast %cst_17 : f32 to vector<8x512xf32>
    %36 = arith.addf %35, %34 : vector<8x512xf32>
    %37 = arith.mulf %26, %36 : vector<8x512xf32>
    %c0_18 = arith.constant 0 : index
    %c0_19 = arith.constant 0 : index
    %38 = vector.load %arg6[%c0_18, %c0_19] : memref<1x512xf32, #tpu.memory_space<vmem>>, vector<1x512xf32>
    %39 = vector.broadcast %38 : vector<1x512xf32> to vector<8x512xf32>
    %40 = arith.mulf %37, %39 : vector<8x512xf32>
    %cst_20 = arith.constant dense<0.000000e+00> : vector<8xf32>
    %41 = vector.multi_reduction <add>, %40, %cst_20 [1] : vector<8x512xf32> to vector<8xf32>
    %42 = vector.shape_cast %41 : vector<8xf32> to vector<8x1xf32>
    %c0_21 = arith.constant 0 : index
    %c0_22 = arith.constant 0 : index
    %43 = vector.load %arg7[%c0_21, %c0_22] : memref<1x1xf32, #tpu.memory_space<vmem>>, vector<1x1xf32>
    %44 = vector.broadcast %43 : vector<1x1xf32> to vector<8x1xf32>
    %45 = arith.addf %42, %44 : vector<8x1xf32>
    %46 = arith.negf %45 : vector<8x1xf32>
    %47 = math.exp %46 : vector<8x1xf32>
    %cst_23 = arith.constant 1.000000e+00 : f32
    %48 = vector.broadcast %cst_23 : f32 to vector<8x1xf32>
    %49 = arith.addf %48, %47 : vector<8x1xf32>
    %50 = arith.divf %48, %49 : vector<8x1xf32>
    %c0_24 = arith.constant 0 : index
    %c0_25 = arith.constant 0 : index
    %51 = vector.load %arg8[%c0_24, %c0_25] : memref<8x1xf32, #tpu.memory_space<vmem>>, vector<8x1xf32>
    tpu.vector_store %arg8[%c0_24, %c0_25], %50 {strides = array<i32>} : memref<8x1xf32, #tpu.memory_space<vmem>>, vector<8x1xf32>,
    return
  }
  func.func @transform_0(%arg0: i32) -> (i32, i32) {
    %c0_i32 = arith.constant 0 : i32
    %c0_i32_0 = arith.constant 0 : i32
    return %arg0, %c0_i32 : i32, i32
  }
  func.func @transform_1(%arg0: i32) -> (i32, i32) {
    %c0_i32 = arith.constant 0 : i32
    %c0_i32_0 = arith.constant 0 : i32
    %c0_i32_1 = arith.constant 0 : i32
    return %c0_i32, %c0_i32_0 : i32, i32
  }
  func.func @transform_2(%arg0: i32) -> (i32, i32) {
    %c0_i32 = arith.constant 0 : i32
    %c0_i32_0 = arith.constant 0 : i32
    %c0_i32_1 = arith.constant 0 : i32
    return %c0_i32, %c0_i32_0 : i32, i32
  }
  func.func @transform_3(%arg0: i32) -> (i32, i32) {
    %c0_i32 = arith.constant 0 : i32
    %c0_i32_0 = arith.constant 0 : i32
    %c0_i32_1 = arith.constant 0 : i32
    return %c0_i32, %c0_i32_0 : i32, i32
  }
  func.func @transform_4(%arg0: i32) -> (i32, i32) {
    %c0_i32 = arith.constant 0 : i32
    %c0_i32_0 = arith.constant 0 : i32
    %c0_i32_1 = arith.constant 0 : i32
    return %c0_i32, %c0_i32_0 : i32, i32
  }
  func.func @transform_5(%arg0: i32) -> (i32, i32) {
    %c0_i32 = arith.constant 0 : i32
    %c0_i32_0 = arith.constant 0 : i32
    %c0_i32_1 = arith.constant 0 : i32
    return %c0_i32, %c0_i32_0 : i32, i32
  }
  func.func @transform_6(%arg0: i32) -> (i32, i32) {
    %c0_i32 = arith.constant 0 : i32
    %c0_i32_0 = arith.constant 0 : i32
    %c0_i32_1 = arith.constant 0 : i32
    return %c0_i32, %c0_i32_0 : i32, i32
  }
  func.func @transform_7(%arg0: i32) -> (i32, i32) {
    %c0_i32 = arith.constant 0 : i32
    %c0_i32_0 = arith.constant 0 : i32
    return %arg0, %c0_i32 : i32, i32
  }
}

</mosaic_0001>

<llo_original>
// kernel: ann_forward.1
$region0: #{ann_forward.1}
  #allocation0 [shape = 'u32[]', space=smem, size = 0x4, offset = 0x4, fixed_abs, tag = 'smem constant byte address 0x4 - core index']
  #allocation1 [shape = 'u32[72,128]{1,0:T(1,128)}', space=vmem, size = 0x9000, scoped, tag = 'internal scratch']
  #allocation2 [shape = 'f32[1,1]{1,0:T(1,128)S(1)}', space=vmem, size = 0x200, scoped, tag = 'scoped memory for ann_forward.1']
  %s0 = inlined_call_operand.vmem [shape: f32[20,8], index: 0, kind: input, shape index: {}]
  %s1 = inlined_call_operand.vmem [shape: f32[8,256], index: 1, kind: input, shape index: {}]
  %s2 = inlined_call_operand.vmem [shape: f32[1,256], index: 2, kind: input, shape index: {}]
  %s3 = inlined_call_operand.hbm [shape: bf16[256,512], index: 3, kind: input, shape index: {}]
  %s4 = inlined_call_operand.vmem [shape: f32[1,512], index: 4, kind: input, shape index: {}]
  %s5 = inlined_call_operand.vmem [shape: f32[1,512], index: 5, kind: input, shape index: {}]
  %s6 = inlined_call_operand.<no memory space> [shape: f32[1,1], index: 6, kind: input, shape index: {}]
  %s7 = inlined_call_operand.vmem [shape: f32[24,1], index: 7, kind: output, shape index: {}]
  %s8 = sld [smem:[#allocation0]]
  $region65: #{ann_forward.1} parent=0
    _
  %s10 = ssub.s32 1, %s8
  %s11 = scalar_select 0, %s10, %s8
  %v12 = vstv %s6
  %13 = vst [vmem:[#allocation2] sm:$0x1] %v12
  $region1: #{ann_forward.1} parent=0
    #allocation3 [shape = 'u8[262144]{0}', space=vmem, size = 0x40000, scoped, tag = 'input window, operand 3, single buffered']
    #allocation4 [shape = 's32[2]{0}', space=sflag, size = 0x8, scoped, tag = 'scoped memory for ann_forward.1']
    %14 = vsyncpa [#allocation4], 0
    loop: start=0, step=1, limit=5
    $region2: #{ann_forward.1} parent=1 // loop_pre_header
      _
    $region3: #{ann_forward.1} parent=1 // loop_header
      %s16 = sphi 0, %s20
      %p17 = scmp.ge.s32.totalorder %s16, 5
      %s26 = sphi 0, %s28
      %s29 = sphi 0, %s26
      %s30 = sphi 0, %s29
      %s46 = sphi 0, %s30
      %s50 = sphi 0, %s50
      %s52 = sphi 0, %s50
      %s53 = sphi 0, %s52
      %s67 = sphi 0, %s53
      %s71 = sphi 0, %s71
      %s73 = sphi 0, %s71
      %s74 = sphi 0, %s73
      %s88 = sphi 0, %s74
      %s92 = sphi 0, %s92
      %s94 = sphi 0, %s92
      %s95 = sphi 0, %s94
      %s109 = sphi 0, %s95
      %s113 = sphi 0, %s113
      %s115 = sphi 0, %s113
      %s116 = sphi 0, %s115
      %s130 = sphi 0, %s116
      %s134 = sphi 0, %s134
      %s136 = sphi 0, %s134
      %s137 = sphi 0, %s136
      %s151 = sphi 0, %s137
      %s155 = sphi 0, %s155
      %s157 = sphi 0, %s155
      %s158 = sphi 0, %s157
      %s172 = sphi 0, %s158
      %s178 = sphi 0, %s180
      %s181 = sphi 0, %s178
      %s182 = sphi 0, %s181
      %s198 = sphi 0, %s182
    $region4: #{ann_forward.1} parent=1 // loop_header_branch
      %19 = sbr.rel (%p17) target = $region8
    $region5: #{ann_forward.1} parent=1 // loop_body
      %s21 = ssub.s32 %s16, 1
      %s22 = ssub.s32 %s16, 2
      %s23 = sadd.s32 %s16, 1
      %s24 = ssub.s32 %s16, %s23
      %p25 = scmp.eq.s32.totalorder %s24, 0
      %s27 = sadd.s32 %s26, 1
      %s28 = scalar_select %p25, %s26, %s27
      %p31 = pneg %p25
      %p32 = scmp.eq.s32.totalorder %s16, 2
      %p33 = por %p31, %p32
      %p34 = scmp.ne.s32.totalorder %s26, %s29
      %p35 = scmp.eq.s32.totalorder %s16, 0
      %p36 = por %p34, %p35
      %p37 = scmp.ne.s32.totalorder %s26, %s29
      %p38 = scmp.eq.s32.totalorder %s21, 2
      %p39 = por %p37, %p38
      %p40 = scmp.ne.s32.totalorder %s29, %s30
      %p41 = scmp.eq.s32.totalorder %s21, 0
      %p42 = por %p40, %p41
      %p43 = scmp.ne.s32.totalorder %s29, %s30
      %p44 = scmp.eq.s32.totalorder %s22, 2
      %p45 = por %p43, %p44
      %p47 = scmp.ne.s32.totalorder %s30, %s46
      %p48 = scmp.eq.s32.totalorder %s22, 0
      %p49 = por %p47, %p48
      %s51 = sadd.s32 %s50, 1
      %p54 = scmp.eq.s32.totalorder %s16, 2
      %p55 = scmp.ne.s32.totalorder %s50, %s52
      %p56 = scmp.eq.s32.totalorder %s16, 0
      %p57 = por %p55, %p56
      %p58 = scmp.ne.s32.totalorder %s50, %s52
      %p59 = scmp.eq.s32.totalorder %s21, 2
      %p60 = por %p58, %p59
      %p61 = scmp.ne.s32.totalorder %s52, %s53
      %p62 = scmp.eq.s32.totalorder %s21, 0
      %p63 = por %p61, %p62
      %p64 = scmp.ne.s32.totalorder %s52, %s53
      %p65 = scmp.eq.s32.totalorder %s22, 2
      %p66 = por %p64, %p65
      %p68 = scmp.ne.s32.totalorder %s53, %s67
      %p69 = scmp.eq.s32.totalorder %s22, 0
      %p70 = por %p68, %p69
      %s72 = sadd.s32 %s71, 1
      %p75 = scmp.eq.s32.totalorder %s16, 2
      %p76 = scmp.ne.s32.totalorder %s71, %s73
      %p77 = scmp.eq.s32.totalorder %s16, 0
      %p78 = por %p76, %p77
      %p79 = scmp.ne.s32.totalorder %s71, %s73
      %p80 = scmp.eq.s32.totalorder %s21, 2
      %p81 = por %p79, %p80
      %p82 = scmp.ne.s32.totalorder %s73, %s74
      %p83 = scmp.eq.s32.totalorder %s21, 0
      %p84 = por %p82, %p83
      %p85 = scmp.ne.s32.totalorder %s73, %s74
      %p86 = scmp.eq.s32.totalorder %s22, 2
      %p87 = por %p85, %p86
      %p89 = scmp.ne.s32.totalorder %s74, %s88
      %p90 = scmp.eq.s32.totalorder %s22, 0
      %p91 = por %p89, %p90
      %s93 = sadd.s32 %s92, 1
      %p96 = scmp.eq.s32.totalorder %s16, 2
      %p97 = scmp.ne.s32.totalorder %s92, %s94
      %p98 = scmp.eq.s32.totalorder %s16, 0
      %p99 = por %p97, %p98
      %p100 = scmp.ne.s32.totalorder %s92, %s94
      %p101 = scmp.eq.s32.totalorder %s21, 2
      %p102 = por %p100, %p101
      %p103 = scmp.ne.s32.totalorder %s94, %s95
      %p104 = scmp.eq.s32.totalorder %s21, 0
      %p105 = por %p103, %p104
      %p106 = scmp.ne.s32.totalorder %s94, %s95
      %p107 = scmp.eq.s32.totalorder %s22, 2
      %p108 = por %p106, %p107
      %p110 = scmp.ne.s32.totalorder %s95, %s109
      %p111 = scmp.eq.s32.totalorder %s22, 0
      %p112 = por %p110, %p111
      %s114 = sadd.s32 %s113, 1
      %p117 = scmp.eq.s32.totalorder %s16, 2
      %p118 = scmp.ne.s32.totalorder %s113, %s115
      %p119 = scmp.eq.s32.totalorder %s16, 0
      %p120 = por %p118, %p119
      %p121 = scmp.ne.s32.totalorder %s113, %s115
      %p122 = scmp.eq.s32.totalorder %s21, 2
      %p123 = por %p121, %p122
      %p124 = scmp.ne.s32.totalorder %s115, %s116
      %p125 = scmp.eq.s32.totalorder %s21, 0
      %p126 = por %p124, %p125
      %p127 = scmp.ne.s32.totalorder %s115, %s116
      %p128 = scmp.eq.s32.totalorder %s22, 2
      %p129 = por %p127, %p128
      %p131 = scmp.ne.s32.totalorder %s116, %s130
      %p132 = scmp.eq.s32.totalorder %s22, 0
      %p133 = por %p131, %p132
      %s135 = sadd.s32 %s134, 1
      %p138 = scmp.eq.s32.totalorder %s16, 2
      %p139 = scmp.ne.s32.totalorder %s134, %s136
      %p140 = scmp.eq.s32.totalorder %s16, 0
      %p141 = por %p139, %p140
      %p142 = scmp.ne.s32.totalorder %s134, %s136
      %p143 = scmp.eq.s32.totalorder %s21, 2
      %p144 = por %p142, %p143
      %p145 = scmp.ne.s32.totalorder %s136, %s137
      %p146 = scmp.eq.s32.totalorder %s21, 0
      %p147 = por %p145, %p146
      %p148 = scmp.ne.s32.totalorder %s136, %s137
      %p149 = scmp.eq.s32.totalorder %s22, 2
      %p150 = por %p148, %p149
      %p152 = scmp.ne.s32.totalorder %s137, %s151
      %p153 = scmp.eq.s32.totalorder %s22, 0
      %p154 = por %p152, %p153
      %s156 = sadd.s32 %s155, 1
      %p159 = scmp.eq.s32.totalorder %s16, 2
      %p160 = scmp.ne.s32.totalorder %s155, %s157
      %p161 = scmp.eq.s32.totalorder %s16, 0
      %p162 = por %p160, %p161
      %p163 = scmp.ne.s32.totalorder %s155, %s157
      %p164 = scmp.eq.s32.totalorder %s21, 2
      %p165 = por %p163, %p164
      %p166 = scmp.ne.s32.totalorder %s157, %s158
      %p167 = scmp.eq.s32.totalorder %s21, 0
      %p168 = por %p166, %p167
      %p169 = scmp.ne.s32.totalorder %s157, %s158
      %p170 = scmp.eq.s32.totalorder %s22, 2
      %p171 = por %p169, %p170
      %p173 = scmp.ne.s32.totalorder %s158, %s172
      %p174 = scmp.eq.s32.totalorder %s22, 0
      %p175 = por %p173, %p174
      %s176 = ssub.s32 %s16, %s23
      %p177 = scmp.eq.s32.totalorder %s176, 0
      %s179 = sadd.s32 %s178, 1
      %s180 = scalar_select %p177, %s178, %s179
      %p183 = pneg %p177
      %p184 = scmp.eq.s32.totalorder %s16, 2
      %p185 = por %p183, %p184
      %p186 = scmp.ne.s32.totalorder %s178, %s181
      %p187 = scmp.eq.s32.totalorder %s16, 0
      %p188 = por %p186, %p187
      %p189 = scmp.ne.s32.totalorder %s178, %s181
      %p190 = scmp.eq.s32.totalorder %s21, 2
      %p191 = por %p189, %p190
      %p192 = scmp.ne.s32.totalorder %s181, %s182
      %p193 = scmp.eq.s32.totalorder %s21, 0
      %p194 = por %p192, %p193
      %p195 = scmp.ne.s32.totalorder %s181, %s182
      %p196 = scmp.eq.s32.totalorder %s22, 2
      %p197 = por %p195, %p196
      %p199 = scmp.ne.s32.totalorder %s182, %s198
      %p200 = scmp.eq.s32.totalorder %s22, 0
      %p201 = por %p199, %p200
      %p202 = scmp.le.s32.totalorder 1, %s16
      %p203 = scmp.lt.s32.totalorder %s16, 4
      %p204 = pnand %p202, %p203
      %p205 = pneg %p204
      // Predicated region
      $region9: #{ann_forward.1} parent=5 // pred_check
        _
      $region10: #{ann_forward.1} parent=5 // pred_check_branch
        %207 = sbr.rel (%p204) target = $region12
      $region11: #{ann_forward.1} parent=5 // pred_region
        %s208 = ssub.s32 %s16, 1
        // Predicated region
        $region13: #{ann_forward.1} parent=11 // pred_check
          %p209 = pneg %p63
        $region14: #{ann_forward.1} parent=11 // pred_check_branch
          %211 = sbr.rel (%p209) target = $region16
        $region15: #{ann_forward.1} parent=11 // pred_region
          _
        $region16: #{ann_forward.1} parent=11 // pred_fallthru
          _
        // Predicated region
        $region17: #{ann_forward.1} parent=11 // pred_check
          %p212 = pneg %p84
        $region18: #{ann_forward.1} parent=11 // pred_check_branch
          %214 = sbr.rel (%p212) target = $region20
        $region19: #{ann_forward.1} parent=11 // pred_region
          _
        $region20: #{ann_forward.1} parent=11 // pred_fallthru
          _
        // Predicated region
        $region21: #{ann_forward.1} parent=11 // pred_check
          %p215 = pneg %p105
        $region22: #{ann_forward.1} parent=11 // pred_check_branch
          %217 = sbr.rel (%p215) target = $region24
        $region23: #{ann_forward.1} parent=11 // pred_region
          %219 = vsyncadd [#allocation4], 0
          %s220 = sshll.u32 %s3, 4
          %s221 = int_to_ptr.hbm [resolvable:$true] %s220
          %s222 = sshll.u32 [#allocation3], 4
          %s223 = int_to_ptr.vmem [resolvable:$true] %s222
          %228 = dma.hbm_to_vmem [thread:$0]  %s221, 8192, %s223, [#allocation4], 256, 256, 16
        $region24: #{ann_forward.1} parent=11 // pred_fallthru
          _
        // Predicated region
        $region25: #{ann_forward.1} parent=11 // pred_check
          %p229 = pneg %p126
        $region26: #{ann_forward.1} parent=11 // pred_check_branch
          %231 = sbr.rel (%p229) target = $region28
        $region27: #{ann_forward.1} parent=11 // pred_region
          _
        $region28: #{ann_forward.1} parent=11 // pred_fallthru
          _
        // Predicated region
        $region29: #{ann_forward.1} parent=11 // pred_check
          %p232 = pneg %p147
        $region30: #{ann_forward.1} parent=11 // pred_check_branch
          %234 = sbr.rel (%p232) target = $region32
        $region31: #{ann_forward.1} parent=11 // pred_region
          _
        $region32: #{ann_forward.1} parent=11 // pred_fallthru
          _
        // Predicated region
        $region33: #{ann_forward.1} parent=11 // pred_check
          %p235 = pneg %p168
        $region34: #{ann_forward.1} parent=11 // pred_check_branch
          %237 = sbr.rel (%p235) target = $region36
        $region35: #{ann_forward.1} parent=11 // pred_region
          _
        $region36: #{ann_forward.1} parent=11 // pred_fallthru
          _
      $region12: #{ann_forward.1} parent=5 // pred_fallthru
        _
      %p238 = scmp.lt.s32.totalorder %s16, 3
      // Predicated region
      $region37: #{ann_forward.1} parent=5 // pred_check
        %p239 = pneg %p238
      $region38: #{ann_forward.1} parent=5 // pred_check_branch
        %241 = sbr.rel (%p239) target = $region40
      $region39: #{ann_forward.1} parent=5 // pred_region
        // Predicated region
        $region41: #{ann_forward.1} parent=39 // pred_check
          %p242 = pneg %p36
        $region42: #{ann_forward.1} parent=39 // pred_check_branch
          %244 = sbr.rel (%p242) target = $region44
        $region43: #{ann_forward.1} parent=39 // pred_region
          %p245 = scmp.lt.s32.totalorder %s16, 2
          %s246 = scalar_select %p245, %s16, 2
          %s247 = smul.addr %s246, 8
          %s248 = scalar_lea.vmem %s0, %s247
        $region44: #{ann_forward.1} parent=39 // pred_fallthru
          _
      $region40: #{ann_forward.1} parent=5 // pred_fallthru
        _
      %p249 = scmp.le.s32.totalorder 1, %s16
      %p250 = scmp.lt.s32.totalorder %s16, 4
      %p251 = pnand %p249, %p250
      %p252 = pneg %p251
      // Predicated region
      $region45: #{ann_forward.1} parent=5 // pred_check
        _
      $region46: #{ann_forward.1} parent=5 // pred_check_branch
        %254 = sbr.rel (%p251) target = $region48
      $region47: #{ann_forward.1} parent=5 // pred_region
        %s255 = ssub.s32 %s16, 1
        // Predicated region
        $region49: #{ann_forward.1} parent=47 // pred_check
          %p256 = pneg %p105
        $region50: #{ann_forward.1} parent=47 // pred_check_branch
          %258 = sbr.rel (%p256) target = $region52
        $region51: #{ann_forward.1} parent=47 // pred_region
          %260 = dma.done [#allocation4], 8192
        $region52: #{ann_forward.1} parent=47 // pred_fallthru
          _
        %p261 = scmp.lt.s32.totalorder %s21, 2
        %s262 = scalar_select %p261, %s21, 2
        %s263 = smul.addr %s262, 8
        %s264 = scalar_lea.vmem %s0, %s263
        %p265 = pneg %p42
        %p266 = pneg %p39
        %p267 = pneg %p63
        %p268 = pneg %p60
        %p269 = pneg %p84
        %p270 = pneg %p81
        %p271 = pneg %p105
        %p272 = pneg %p102
        %p273 = pneg %p126
        %p274 = pneg %p123
        %p275 = pneg %p147
        %p276 = pneg %p144
        %p277 = pneg %p168
        %p278 = pneg %p165
        %p279 = pneg %p194
        %p280 = pneg %p191
        %p281 = scmp.lt.s32.totalorder %s21, 2
        %s282 = scalar_select %p281, %s21, 2
        %s283 = smul.addr %s282, 8
        %s284 = scalar_lea.vmem %s7, %s283
        %p285 = scmp.lt.s32.totalorder %s21, 2
        %s286 = scalar_select %p285, %s21, 2
        %s287 = smul.addr %s286, 8
        %s288 = scalar_lea.vmem %s0, %s287
        %p289 = scmp.lt.s32.totalorder %s21, 2
        %s290 = scalar_select %p289, %s21, 2
        %s291 = smul.addr %s290, 8
        %s292 = scalar_lea.vmem %s7, %s291
        %v293 = vld [vmem:[%s288] sm:$0xff]
        %v294 = vld [vmem:[%s1] sm:$0xff]
        %v295 = vld [vmem:[%s1 + $0x8] sm:$0xff]
        %v296 = vld [vmem:[%s2] sm:$0x3]
        %v298 = vperm.slane %v296, 0
        %v299 = vperm.slane %v296, 1
        %vm302 = vcmask 64512
        %v304 = vsel %vm302, %v293, 0
        %306 = vmatpush.msra.mxu0 0.0
        %307 = vmatpush.msra.mxu0 0.0
        %308 = vmatpush.msra.mxu0 0.0
        %309 = vmatpush.msra.mxu0 0.0
        %310 = vmatpush.msra.mxu0 0.0
        %311 = vmatpush.msra.mxu0 0.0
        %312 = vmatpush.msra.mxu0 0.0
        %313 = vmatpush.msra.mxu0 0.0
        %314 = vmatpush.msra.mxu0 0.0
        %315 = vmatpush.msra.mxu0 0.0
        %316 = vmatpush.msra.mxu0 0.0
        %317 = vmatpush.msra.mxu0 0.0
        %318 = vmatpush.msra.mxu0 0.0
        %319 = vmatpush.msra.mxu0 0.0
        %320 = vmatpush.msra.mxu0 0.0
        %321 = vmatpush.msra.mxu0 %v294
        %322 = vmatmul.f32.gmra.mxu0 %v304
        %v323 = vpop.f32.mrf.mxu0
        %v324 = vadd.f32 %v298, %v323
        %325 = vdwg.mxu0
        %326 = vmatpush.msra.mxu0 0.0
        %327 = vmatpush.msra.mxu0 0.0
        %328 = vmatpush.msra.mxu0 0.0
        %329 = vmatpush.msra.mxu0 0.0
        %330 = vmatpush.msra.mxu0 0.0
        %331 = vmatpush.msra.mxu0 0.0
        %332 = vmatpush.msra.mxu0 0.0
        %333 = vmatpush.msra.mxu0 0.0
        %334 = vmatpush.msra.mxu0 0.0
        %335 = vmatpush.msra.mxu0 0.0
        %336 = vmatpush.msra.mxu0 0.0
        %337 = vmatpush.msra.mxu0 0.0
        %338 = vmatpush.msra.mxu0 0.0
        %339 = vmatpush.msra.mxu0 0.0
        %340 = vmatpush.msra.mxu0 0.0
        %341 = vmatpush.msra.mxu0 %v295
        %342 = vmatmul.f32.gmra.mxu0 %v304
        %v343 = vpop.f32.mrf.mxu0
        %v344 = vadd.f32 %v299, %v343
        %345 = vdwg.mxu0
        %v346 = vmul.f32 %v324, 0.5
        %v347 = vmul.f32 %v344, 0.5
        %v348 = vmul.f32 %v324, 0.044715
        %v349 = vmul.f32 %v344, 0.044715
        %v350 = vmul.f32 %v348, %v324
        %v351 = vmul.f32 %v349, %v344
        %v352 = vmul.f32 %v350, %v324
        %v353 = vmul.f32 %v351, %v344
        %v354 = vadd.f32 %v324, %v352
        %v355 = vadd.f32 %v344, %v353
        %v356 = vmul.f32 %v354, 0.7978846
        %v357 = vmul.f32 %v355, 0.7978846
        %v358 = vtanh.pop %v356
        %v359 = vtanh.pop %v357
        %v360 = vadd.f32 %v358, 1.0
        %v361 = vadd.f32 %v359, 1.0
        %v362 = vmul.f32 %v346, %v360
        %v363 = vmul.f32 %v347, %v361
        %v364 = vpack.c.bf16 %v362, %v362
        %v365 = vpack.c.bf16 %v363, %v363
        %v366 = vld [vmem:[#allocation3] sm:$0xff]
        %v367 = vld [vmem:[#allocation3 + $0x8] sm:$0xff]
        %v368 = vld [vmem:[#allocation3 + $0x10] sm:$0xff]
        %v369 = vld [vmem:[#allocation3 + $0x18] sm:$0xff]
        %v370 = vld [vmem:[#allocation3 + $0x20] sm:$0xff]
        %v371 = vld [vmem:[#allocation3 + $0x28] sm:$0xff]
        %v372 = vld [vmem:[#allocation3 + $0x30] sm:$0xff]
        %v373 = vld [vmem:[#allocation3 + $0x38] sm:$0xff]
        %v374 = vld [vmem:[#allocation3 + $0x40] sm:$0xff]
        %v375 = vld [vmem:[#allocation3 + $0x48] sm:$0xff]
        %v376 = vld [vmem:[#allocation3 + $0x50] sm:$0xff]
        %v377 = vld [vmem:[#allocation3 + $0x58] sm:$0xff]
        %v378 = vld [vmem:[#allocation3 + $0x60] sm:$0xff]
        %v379 = vld [vmem:[#allocation3 + $0x68] sm:$0xff]
        %v380 = vld [vmem:[#allocation3 + $0x70] sm:$0xff]
        %v381 = vld [vmem:[#allocation3 + $0x78] sm:$0xff]
        %v382 = vld [vmem:[#allocation3 + $0x80] sm:$0xff]
        %v383 = vld [vmem:[#allocation3 + $0x88] sm:$0xff]
        %v384 = vld [vmem:[#allocation3 + $0x90] sm:$0xff]
        %v385 = vld [vmem:[#allocation3 + $0x98] sm:$0xff]
        %v386 = vld [vmem:[#allocation3 + $0xa0] sm:$0xff]
        %v387 = vld [vmem:[#allocation3 + $0xa8] sm:$0xff]
        %v388 = vld [vmem:[#allocation3 + $0xb0] sm:$0xff]
        %v389 = vld [vmem:[#allocation3 + $0xb8] sm:$0xff]
        %v390 = vld [vmem:[#allocation3 + $0xc0] sm:$0xff]
        %v391 = vld [vmem:[#allocation3 + $0xc8] sm:$0xff]
        %v392 = vld [vmem:[#allocation3 + $0xd0] sm:$0xff]
        %v393 = vld [vmem:[#allocation3 + $0xd8] sm:$0xff]
        %v394 = vld [vmem:[#allocation3 + $0xe0] sm:$0xff]
        %v395 = vld [vmem:[#allocation3 + $0xe8] sm:$0xff]
        %v396 = vld [vmem:[#allocation3 + $0xf0] sm:$0xff]
        %v397 = vld [vmem:[#allocation3 + $0xf8] sm:$0xff]
        %v398 = vld [vmem:[#allocation3 + $0x100] sm:$0xff]
        %v399 = vld [vmem:[#allocation3 + $0x108] sm:$0xff]
        %v400 = vld [vmem:[#allocation3 + $0x110] sm:$0xff]
        %v401 = vld [vmem:[#allocation3 + $0x118] sm:$0xff]
        %v402 = vld [vmem:[#allocation3 + $0x120] sm:$0xff]
        %v403 = vld [vmem:[#allocation3 + $0x128] sm:$0xff]
        %v404 = vld [vmem:[#allocation3 + $0x130] sm:$0xff]
        %v405 = vld [vmem:[#allocation3 + $0x138] sm:$0xff]
        %v406 = vld [vmem:[#allocation3 + $0x140] sm:$0xff]
        %v407 = vld [vmem:[#allocation3 + $0x148] sm:$0xff]
        %v408 = vld [vmem:[#allocation3 + $0x150] sm:$0xff]
        %v409 = vld [vmem:[#allocation3 + $0x158] sm:$0xff]
        %v410 = vld [vmem:[#allocation3 + $0x160] sm:$0xff]
        %v411 = vld [vmem:[#allocation3 + $0x168] sm:$0xff]
        %v412 = vld [vmem:[#allocation3 + $0x170] sm:$0xff]
        %v413 = vld [vmem:[#allocation3 + $0x178] sm:$0xff]
        %v414 = vld [vmem:[#allocation3 + $0x180] sm:$0xff]
        %v415 = vld [vmem:[#allocation3 + $0x188] sm:$0xff]
        %v416 = vld [vmem:[#allocation3 + $0x190] sm:$0xff]
        %v417 = vld [vmem:[#allocation3 + $0x198] sm:$0xff]
        %v418 = vld [vmem:[#allocation3 + $0x1a0] sm:$0xff]
        %v419 = vld [vmem:[#allocation3 + $0x1a8] sm:$0xff]
        %v420 = vld [vmem:[#allocation3 + $0x1b0] sm:$0xff]
        %v421 = vld [vmem:[#allocation3 + $0x1b8] sm:$0xff]
        %v422 = vld [vmem:[#allocation3 + $0x1c0] sm:$0xff]
        %v423 = vld [vmem:[#allocation3 + $0x1c8] sm:$0xff]
        %v424 = vld [vmem:[#allocation3 + $0x1d0] sm:$0xff]
        %v425 = vld [vmem:[#allocation3 + $0x1d8] sm:$0xff]
        %v426 = vld [vmem:[#allocation3 + $0x1e0] sm:$0xff]
        %v427 = vld [vmem:[#allocation3 + $0x1e8] sm:$0xff]
        %v428 = vld [vmem:[#allocation3 + $0x1f0] sm:$0xff]
        %v429 = vld [vmem:[#allocation3 + $0x1f8] sm:$0xff]
        %v430 = vld [vmem:[%s4] sm:$0xf]
        %v432 = vperm.slane %v430, 0
        %v433 = vperm.slane %v430, 1
        %v434 = vperm.slane %v430, 2
        %v435 = vperm.slane %v430, 3
        %v504 = vunpack.c.l.b16 %v366
        %v505 = vunpack.c.h.b16 %v366
        %v506 = vunpack.c.l.b16 %v367
        %v507 = vunpack.c.h.b16 %v367
        %v508 = vunpack.c.l.b16 %v368
        %v509 = vunpack.c.h.b16 %v368
        %v510 = vunpack.c.l.b16 %v369
        %v511 = vunpack.c.h.b16 %v369
        %v512 = vunpack.c.l.b16 %v370
        %v513 = vunpack.c.h.b16 %v370
        %v514 = vunpack.c.l.b16 %v371
        %v515 = vunpack.c.h.b16 %v371
        %v516 = vunpack.c.l.b16 %v372
        %v517 = vunpack.c.h.b16 %v372
        %v518 = vunpack.c.l.b16 %v373
        %v519 = vunpack.c.h.b16 %v373
        %v520 = vunpack.c.l.b16 %v374
        %v521 = vunpack.c.h.b16 %v374
        %v522 = vunpack.c.l.b16 %v375
        %v523 = vunpack.c.h.b16 %v375
        %v524 = vunpack.c.l.b16 %v376
        %v525 = vunpack.c.h.b16 %v376
        %v526 = vunpack.c.l.b16 %v377
        %v527 = vunpack.c.h.b16 %v377
        %v528 = vunpack.c.l.b16 %v378
        %v529 = vunpack.c.h.b16 %v378
        %v530 = vunpack.c.l.b16 %v379
        %v531 = vunpack.c.h.b16 %v379
        %v532 = vunpack.c.l.b16 %v380
        %v533 = vunpack.c.h.b16 %v380
        %v534 = vunpack.c.l.b16 %v381
        %v535 = vunpack.c.h.b16 %v381
        %v536 = vunpack.c.l.b16 %v382
        %v537 = vunpack.c.h.b16 %v382
        %v538 = vunpack.c.l.b16 %v383
        %v539 = vunpack.c.h.b16 %v383
        %v540 = vunpack.c.l.b16 %v384
        %v541 = vunpack.c.h.b16 %v384
        %v542 = vunpack.c.l.b16 %v385
        %v543 = vunpack.c.h.b16 %v385
        %v544 = vunpack.c.l.b16 %v386
        %v545 = vunpack.c.h.b16 %v386
        %v546 = vunpack.c.l.b16 %v387
        %v547 = vunpack.c.h.b16 %v387
        %v548 = vunpack.c.l.b16 %v388
        %v549 = vunpack.c.h.b16 %v388
        %v550 = vunpack.c.l.b16 %v389
        %v551 = vunpack.c.h.b16 %v389
        %v552 = vunpack.c.l.b16 %v390
        %v553 = vunpack.c.h.b16 %v390
        %v554 = vunpack.c.l.b16 %v391
        %v555 = vunpack.c.h.b16 %v391
        %v556 = vunpack.c.l.b16 %v392
        %v557 = vunpack.c.h.b16 %v392
        %v558 = vunpack.c.l.b16 %v393
        %v559 = vunpack.c.h.b16 %v393
        %v560 = vunpack.c.l.b16 %v394
        %v561 = vunpack.c.h.b16 %v394
        %v562 = vunpack.c.l.b16 %v395
        %v563 = vunpack.c.h.b16 %v395
        %v564 = vunpack.c.l.b16 %v396
        %v565 = vunpack.c.h.b16 %v396
        %v566 = vunpack.c.l.b16 %v397
        %v567 = vunpack.c.h.b16 %v397
        %v568 = vunpack.c.l.b16 %v398
        %v569 = vunpack.c.h.b16 %v398
        %v570 = vunpack.c.l.b16 %v399
        %v571 = vunpack.c.h.b16 %v399
        %v572 = vunpack.c.l.b16 %v400
        %v573 = vunpack.c.h.b16 %v400
        %v574 = vunpack.c.l.b16 %v401
        %v575 = vunpack.c.h.b16 %v401
        %v576 = vunpack.c.l.b16 %v402
        %v577 = vunpack.c.h.b16 %v402
        %v578 = vunpack.c.l.b16 %v403
        %v579 = vunpack.c.h.b16 %v403
        %v580 = vunpack.c.l.b16 %v404
        %v581 = vunpack.c.h.b16 %v404
        %v582 = vunpack.c.l.b16 %v405
        %v583 = vunpack.c.h.b16 %v405
        %v584 = vunpack.c.l.b16 %v406
        %v585 = vunpack.c.h.b16 %v406
        %v586 = vunpack.c.l.b16 %v407
        %v587 = vunpack.c.h.b16 %v407
        %v588 = vunpack.c.l.b16 %v408
        %v589 = vunpack.c.h.b16 %v408
        %v590 = vunpack.c.l.b16 %v409
        %v591 = vunpack.c.h.b16 %v409
        %v592 = vunpack.c.l.b16 %v410
        %v593 = vunpack.c.h.b16 %v410
        %v594 = vunpack.c.l.b16 %v411
        %v595 = vunpack.c.h.b16 %v411
        %v596 = vunpack.c.l.b16 %v412
        %v597 = vunpack.c.h.b16 %v412
        %v598 = vunpack.c.l.b16 %v413
        %v599 = vunpack.c.h.b16 %v413
        %v600 = vunpack.c.l.b16 %v414
        %v601 = vunpack.c.h.b16 %v414
        %v602 = vunpack.c.l.b16 %v415
        %v603 = vunpack.c.h.b16 %v415
        %v604 = vunpack.c.l.b16 %v416
        %v605 = vunpack.c.h.b16 %v416
        %v606 = vunpack.c.l.b16 %v417
        %v607 = vunpack.c.h.b16 %v417
        %v608 = vunpack.c.l.b16 %v418
        %v609 = vunpack.c.h.b16 %v418
        %v610 = vunpack.c.l.b16 %v419
        %v611 = vunpack.c.h.b16 %v419
        %v612 = vunpack.c.l.b16 %v420
        %v613 = vunpack.c.h.b16 %v420
        %v614 = vunpack.c.l.b16 %v421
        %v615 = vunpack.c.h.b16 %v421
        %v616 = vunpack.c.l.b16 %v422
        %v617 = vunpack.c.h.b16 %v422
        %v618 = vunpack.c.l.b16 %v423
        %v619 = vunpack.c.h.b16 %v423
        %v620 = vunpack.c.l.b16 %v424
        %v621 = vunpack.c.h.b16 %v424
        %v622 = vunpack.c.l.b16 %v425
        %v623 = vunpack.c.h.b16 %v425
        %v624 = vunpack.c.l.b16 %v426
        %v625 = vunpack.c.h.b16 %v426
        %v626 = vunpack.c.l.b16 %v427
        %v627 = vunpack.c.h.b16 %v427
        %v628 = vunpack.c.l.b16 %v428
        %v629 = vunpack.c.h.b16 %v428
        %v630 = vunpack.c.l.b16 %v429
        %v631 = vunpack.c.h.b16 %v429
        %v632 = vpack.c.b16 %v508, %v504
        %v633 = vpack.c.b16 %v509, %v505
        %v634 = vpack.c.b16 %v510, %v506
        %v635 = vpack.c.b16 %v511, %v507
        %v636 = vpack.c.b16 %v516, %v512
        %v637 = vpack.c.b16 %v517, %v513
        %v638 = vpack.c.b16 %v518, %v514
        %v639 = vpack.c.b16 %v519, %v515
        %v640 = vpack.c.b16 %v524, %v520
        %v641 = vpack.c.b16 %v525, %v521
        %v642 = vpack.c.b16 %v526, %v522
        %v643 = vpack.c.b16 %v527, %v523
        %v644 = vpack.c.b16 %v532, %v528
        %v645 = vpack.c.b16 %v533, %v529
        %v646 = vpack.c.b16 %v534, %v530
        %v647 = vpack.c.b16 %v535, %v531
        %v648 = vpack.c.b16 %v540, %v536
        %v649 = vpack.c.b16 %v541, %v537
        %v650 = vpack.c.b16 %v542, %v538
        %v651 = vpack.c.b16 %v543, %v539
        %v652 = vpack.c.b16 %v548, %v544
        %v653 = vpack.c.b16 %v549, %v545
        %v654 = vpack.c.b16 %v550, %v546
        %v655 = vpack.c.b16 %v551, %v547
        %v656 = vpack.c.b16 %v556, %v552
        %v657 = vpack.c.b16 %v557, %v553
        %v658 = vpack.c.b16 %v558, %v554
        %v659 = vpack.c.b16 %v559, %v555
        %v660 = vpack.c.b16 %v564, %v560
        %v661 = vpack.c.b16 %v565, %v561
        %v662 = vpack.c.b16 %v566, %v562
        %v663 = vpack.c.b16 %v567, %v563
        %v664 = vpack.c.b16 %v572, %v568
        %v665 = vpack.c.b16 %v573, %v569
        %v666 = vpack.c.b16 %v574, %v570
        %v667 = vpack.c.b16 %v575, %v571
        %v668 = vpack.c.b16 %v580, %v576
        %v669 = vpack.c.b16 %v581, %v577
        %v670 = vpack.c.b16 %v582, %v578
        %v671 = vpack.c.b16 %v583, %v579
        %v672 = vpack.c.b16 %v588, %v584
        %v673 = vpack.c.b16 %v589, %v585
        %v674 = vpack.c.b16 %v590, %v586
        %v675 = vpack.c.b16 %v591, %v587
        %v676 = vpack.c.b16 %v596, %v592
        %v677 = vpack.c.b16 %v597, %v593
        %v678 = vpack.c.b16 %v598, %v594
        %v679 = vpack.c.b16 %v599, %v595
        %v680 = vpack.c.b16 %v604, %v600
        %v681 = vpack.c.b16 %v605, %v601
        %v682 = vpack.c.b16 %v606, %v602
        %v683 = vpack.c.b16 %v607, %v603
        %v684 = vpack.c.b16 %v612, %v608
        %v685 = vpack.c.b16 %v613, %v609
        %v686 = vpack.c.b16 %v614, %v610
        %v687 = vpack.c.b16 %v615, %v611
        %v688 = vpack.c.b16 %v620, %v616
        %v689 = vpack.c.b16 %v621, %v617
        %v690 = vpack.c.b16 %v622, %v618
        %v691 = vpack.c.b16 %v623, %v619
        %v692 = vpack.c.b16 %v628, %v624
        %v693 = vpack.c.b16 %v629, %v625
        %v694 = vpack.c.b16 %v630, %v626
        %v695 = vpack.c.b16 %v631, %v627
        %760 = vmatpush.bf16.msra.mxu0 %v660
        %761 = vmatpush.bf16.msra.mxu0 %v656
        %762 = vmatpush.bf16.msra.mxu0 %v652
        %763 = vmatpush.bf16.msra.mxu0 %v648
        %764 = vmatpush.bf16.msra.mxu0 %v644
        %765 = vmatpush.bf16.msra.mxu0 %v640
        %766 = vmatpush.bf16.msra.mxu0 %v636
        %767 = vmatpush.bf16.msra.mxu0 %v632
        %768 = vmatmul.bf16.gmra.mxu0 %v364
        %v769 = vpop.f32.mrf.mxu0
        %v770 = vadd.f32 %v432, %v769
        %v771 = vpop.f32.mrf.mxu0
        %772 = vdwg.mxu0
        %773 = vmatpush.bf16.msra.mxu0 %v692
        %774 = vmatpush.bf16.msra.mxu0 %v688
        %775 = vmatpush.bf16.msra.mxu0 %v684
        %776 = vmatpush.bf16.msra.mxu0 %v680
        %777 = vmatpush.bf16.msra.mxu0 %v676
        %778 = vmatpush.bf16.msra.mxu0 %v672
        %779 = vmatpush.bf16.msra.mxu0 %v668
        %780 = vmatpush.bf16.msra.mxu0 %v664
        %781 = vmatmul.bf16.gmra.mxu0 %v365
        %v782 = vpop.f32.mrf.mxu0
        %v783 = vadd.f32 %v770, %v782
        %v784 = vpop.f32.mrf.mxu0
        %785 = vdwg.mxu0
        %786 = vmatpush.bf16.msra.mxu0 %v661
        %787 = vmatpush.bf16.msra.mxu0 %v657
        %788 = vmatpush.bf16.msra.mxu0 %v653
        %789 = vmatpush.bf16.msra.mxu0 %v649
        %790 = vmatpush.bf16.msra.mxu0 %v645
        %791 = vmatpush.bf16.msra.mxu0 %v641
        %792 = vmatpush.bf16.msra.mxu0 %v637
        %793 = vmatpush.bf16.msra.mxu0 %v633
        %794 = vmatmul.bf16.gmra.mxu0 %v364
        %v795 = vpop.f32.mrf.mxu0
        %v796 = vadd.f32 %v433, %v795
        %v797 = vpop.f32.mrf.mxu0
        %798 = vdwg.mxu0
        %799 = vmatpush.bf16.msra.mxu0 %v693
        %800 = vmatpush.bf16.msra.mxu0 %v689
        %801 = vmatpush.bf16.msra.mxu0 %v685
        %802 = vmatpush.bf16.msra.mxu0 %v681
        %803 = vmatpush.bf16.msra.mxu0 %v677
        %804 = vmatpush.bf16.msra.mxu0 %v673
        %805 = vmatpush.bf16.msra.mxu0 %v669
        %806 = vmatpush.bf16.msra.mxu0 %v665
        %807 = vmatmul.bf16.gmra.mxu0 %v365
        %v808 = vpop.f32.mrf.mxu0
        %v809 = vadd.f32 %v796, %v808
        %v810 = vpop.f32.mrf.mxu0
        %811 = vdwg.mxu0
        %812 = vmatpush.bf16.msra.mxu0 %v662
        %813 = vmatpush.bf16.msra.mxu0 %v658
        %814 = vmatpush.bf16.msra.mxu0 %v654
        %815 = vmatpush.bf16.msra.mxu0 %v650
        %816 = vmatpush.bf16.msra.mxu0 %v646
        %817 = vmatpush.bf16.msra.mxu0 %v642
        %818 = vmatpush.bf16.msra.mxu0 %v638
        %819 = vmatpush.bf16.msra.mxu0 %v634
        %820 = vmatmul.bf16.gmra.mxu0 %v364
        %v821 = vpop.f32.mrf.mxu0
        %v822 = vadd.f32 %v434, %v821
        %v823 = vpop.f32.mrf.mxu0
        %824 = vdwg.mxu0
        %825 = vmatpush.bf16.msra.mxu0 %v694
        %826 = vmatpush.bf16.msra.mxu0 %v690
        %827 = vmatpush.bf16.msra.mxu0 %v686
        %828 = vmatpush.bf16.msra.mxu0 %v682
        %829 = vmatpush.bf16.msra.mxu0 %v678
        %830 = vmatpush.bf16.msra.mxu0 %v674
        %831 = vmatpush.bf16.msra.mxu0 %v670
        %832 = vmatpush.bf16.msra.mxu0 %v666
        %833 = vmatmul.bf16.gmra.mxu0 %v365
        %v834 = vpop.f32.mrf.mxu0
        %v835 = vadd.f32 %v822, %v834
        %v836 = vpop.f32.mrf.mxu0
        %837 = vdwg.mxu0
        %838 = vmatpush.bf16.msra.mxu0 %v663
        %839 = vmatpush.bf16.msra.mxu0 %v659
        %840 = vmatpush.bf16.msra.mxu0 %v655
        %841 = vmatpush.bf16.msra.mxu0 %v651
        %842 = vmatpush.bf16.msra.mxu0 %v647
        %843 = vmatpush.bf16.msra.mxu0 %v643
        %844 = vmatpush.bf16.msra.mxu0 %v639
        %845 = vmatpush.bf16.msra.mxu0 %v635
        %846 = vmatmul.bf16.gmra.mxu0 %v364
        %v847 = vpop.f32.mrf.mxu0
        %v848 = vadd.f32 %v435, %v847
        %v849 = vpop.f32.mrf.mxu0
        %850 = vdwg.mxu0
        %851 = vmatpush.bf16.msra.mxu0 %v695
        %852 = vmatpush.bf16.msra.mxu0 %v691
        %853 = vmatpush.bf16.msra.mxu0 %v687
        %854 = vmatpush.bf16.msra.mxu0 %v683
        %855 = vmatpush.bf16.msra.mxu0 %v679
        %856 = vmatpush.bf16.msra.mxu0 %v675
        %857 = vmatpush.bf16.msra.mxu0 %v671
        %858 = vmatpush.bf16.msra.mxu0 %v667
        %859 = vmatmul.bf16.gmra.mxu0 %v365
        %v860 = vpop.f32.mrf.mxu0
        %v861 = vadd.f32 %v848, %v860
        %v862 = vpop.f32.mrf.mxu0
        %863 = vdwg.mxu0
        %v864 = vmul.f32 %v783, 0.5
        %v865 = vmul.f32 %v809, 0.5
        %v866 = vmul.f32 %v835, 0.5
        %v867 = vmul.f32 %v861, 0.5
        %v868 = vmul.f32 %v783, 0.044715
        %v869 = vmul.f32 %v809, 0.044715
        %v870 = vmul.f32 %v835, 0.044715
        %v871 = vmul.f32 %v861, 0.044715
        %v872 = vmul.f32 %v868, %v783
        %v873 = vmul.f32 %v869, %v809
        %v874 = vmul.f32 %v870, %v835
        %v875 = vmul.f32 %v871, %v861
        %v876 = vmul.f32 %v872, %v783
        %v877 = vmul.f32 %v873, %v809
        %v878 = vmul.f32 %v874, %v835
        %v879 = vmul.f32 %v875, %v861
        %v880 = vadd.f32 %v783, %v876
        %v881 = vadd.f32 %v809, %v877
        %v882 = vadd.f32 %v835, %v878
        %v883 = vadd.f32 %v861, %v879
        %v884 = vmul.f32 %v880, 0.7978846
        %v885 = vmul.f32 %v881, 0.7978846
        %v886 = vmul.f32 %v882, 0.7978846
        %v887 = vmul.f32 %v883, 0.7978846
        %v888 = vtanh.pop %v884
        %v889 = vtanh.pop %v885
        %v890 = vtanh.pop %v886
        %v891 = vtanh.pop %v887
        %v892 = vadd.f32 %v888, 1.0
        %v893 = vadd.f32 %v889, 1.0
        %v894 = vadd.f32 %v890, 1.0
        %v895 = vadd.f32 %v891, 1.0
        %v896 = vmul.f32 %v864, %v892
        %v897 = vmul.f32 %v865, %v893
        %v898 = vmul.f32 %v866, %v894
        %v899 = vmul.f32 %v867, %v895
        %v900 = vld [vmem:[%s5] sm:$0xf]
        %v902 = vperm.slane %v900, 0
        %v903 = vperm.slane %v900, 1
        %v904 = vperm.slane %v900, 2
        %v905 = vperm.slane %v900, 3
        %v910 = vmul.f32 %v896, %v902
        %v911 = vmul.f32 %v897, %v903
        %v912 = vmul.f32 %v898, %v904
        %v913 = vmul.f32 %v899, %v905
        %v914 = vadd.f32 %v910, %v911
        %v915 = vadd.f32 %v914, %v912
        %v916 = vadd.f32 %v915, %v913
        %917 = vadd.xlane.f32.xlu0 %v916
        %v918 = vpop.xlane.xlu0 %917
        %v919 = vld [vmem:[#allocation2] sm:$0x1]
        %v921 = vperm.slane %v919, 0
        %v923 = vadd.f32 %v918, %v921
        %v924 = vxor.u32 %v923, 2147483648
        %v925 = vmul.f32 %v924, 1.442695
        %v926 = vpow.pop %v925
        %v927 = vadd.f32 %v926, 1.0
        %v928 = vrcp.pop %v927
        %v929 = vmul.f32 %v927, %v928
        %v930 = vsub.f32 1.0, %v929
        %v931 = vmul.f32 %v928, %v930
        %v932 = vadd.f32 %v928, %v931
        %vm933 = vweird.f32 %v927
        %vm934 = vweird.f32 %v928
        %vm935 = vmor %vm933, %vm934
        %v936 = vsel %vm935, %v928, %v932
        %v937 = vand.u32 2147483647, %v927
        %vm938 = vcmp.eq.f32.partialorder %v937, 8.507059e+37
        %v939 = vand.u32 %v927, 2147483648
        %v940 = vor.u32 1.1754944e-38, %v939
        %v941 = vsel %vm938, %v940, %v936
        %v942 = vmul.f32 1.0, %v941
        %vm943 = vcmask 7168
        %944 = vst.msk [vmem:[%s292] sm:$0xff] %vm943, %v942
        %p945 = scmp.lt.s32.totalorder %s21, 2
        %s946 = scalar_select %p945, %s21, 2
        %s947 = smul.addr %s946, 8
        %s948 = scalar_lea.vmem %s7, %s947
        // Predicated region
        $region53: #{ann_forward.1} parent=47 // pred_check
          %p949 = pneg %p191
        $region54: #{ann_forward.1} parent=47 // pred_check_branch
          %951 = sbr.rel (%p949) target = $region56
        $region55: #{ann_forward.1} parent=47 // pred_region
          _
        $region56: #{ann_forward.1} parent=47 // pred_fallthru
          _
      $region48: #{ann_forward.1} parent=5 // pred_fallthru
        _
      %p952 = scmp.le.s32.totalorder 2, %s16
      // Predicated region
      $region57: #{ann_forward.1} parent=5 // pred_check
        %p953 = pneg %p952
      $region58: #{ann_forward.1} parent=5 // pred_check_branch
        %955 = sbr.rel (%p953) target = $region60
      $region59: #{ann_forward.1} parent=5 // pred_region
        %s956 = ssub.s32 %s16, 2
        // Predicated region
        $region61: #{ann_forward.1} parent=59 // pred_check
          %p957 = pneg %p197
        $region62: #{ann_forward.1} parent=59 // pred_check_branch
          %959 = sbr.rel (%p957) target = $region64
        $region63: #{ann_forward.1} parent=59 // pred_region
          %p960 = scmp.lt.s32.totalorder %s22, 2
          %s961 = scalar_select %p960, %s22, 2
          %s962 = smul.addr %s961, 8
          %s963 = scalar_lea.vmem %s7, %s962
        $region64: #{ann_forward.1} parent=59 // pred_fallthru
          _
      $region60: #{ann_forward.1} parent=5 // pred_fallthru
        _
    $region6: #{ann_forward.1} parent=1 // loop_footer
      %s20 = sadd.s32 1, %s16
    $region7: #{ann_forward.1} parent=1 // loop_footer_branch
      %15 = sbr.rel target = $region3
    $region8: #{ann_forward.1} parent=1 // loop_exit
      _
    %964 = vsyncpa [#allocation4], 1
    %s965 = scalar_lea.sflag [#allocation4], 1
    %966 = vsyncpa %s965, 1

</llo_original>
